<compile_context>
chip_gen: v6e
topology: v6e:2x2x1
jax: 0.10.0
libtpu: 0.0.40
codegen_flags: <defaults>
</compile_context>

<pallas_src>
import jax
import jax.numpy as jnp
from jax.experimental import pallas as pl
from jax.experimental.pallas import tpu as pltpu


def _sage_block_kernel(x_ref, adj_ref, w_ref, b_ref, o_ref):
    # Tiles:
    #   x_ref   (Bt, N,  Cin+1)    bf16   (last column is all ones -> degree)
    #   adj_ref (Bt, TM, N)        bf16
    #   w_ref   (Cin, Cout_pad)    bf16   (zero-padded columns)
    #   b_ref   (1, Cout_pad)      f32    (zero-padded columns)
    #   o_ref   (Bt, TM, Cout_pad) f32
    bt, tm, n = adj_ref.shape
    cin_ext = x_ref.shape[-1]
    cin = cin_ext - 1
    cout = o_ref.shape[-1]

    t = pl.program_id(1)

    adj = adj_ref[...]                                          # (Bt, TM, N)
    # add_loop=True: SET diagonal entries to 1 (not add).  Mask is built at
    # (TM, N) and broadcast over Bt to keep the iota/vreg footprint small.
    row = jax.lax.broadcasted_iota(jnp.int32, (tm, n), 0) + t * tm
    col = jax.lax.broadcasted_iota(jnp.int32, (tm, n), 1)
    diag = (row == col)[None, :, :]                             # (1, TM, N)
    adj = jnp.where(diag, jnp.array(1, adj.dtype), adj)

    # Fused aggregation + degree: the last column of x_ext is all ones, so the
    # last output column of this matmul is the self-loop-included row degree.
    agg_ext = jnp.einsum('bij,bjc->bic', adj, x_ref[...],
                         preferred_element_type=jnp.float32)    # (Bt, TM, Cin+1) f32
    # Leading-dim merge is relayout-free because TM is a multiple of 8
    # (or Bt == 1 when it is not).
    agg_ext = agg_ext.reshape(bt * tm, cin_ext)

    deg = jnp.maximum(agg_ext[:, cin:cin + 1], 1.0)             # clamp(min=1)
    agg = agg_ext[:, :cin] / deg                                # mean aggregation

    # Linear layer over all Bt*TM rows at once (lane-dense Cout_pad columns).
    h = jnp.dot(agg.astype(w_ref.dtype), w_ref[...],
                preferred_element_type=jnp.float32)             # (Bt*TM, Cout_pad)
    h = h + b_ref[...]                                          # f32 broadcast add
    h = jnp.maximum(h, 0.0)                                     # ReLU

    # F.normalize(p=2, dim=-1): h / max(||h||, 1e-12) == h * rsqrt(max(ssq, 1e-24))
    ssq = jnp.sum(h * h, axis=-1, keepdims=True)
    h = h * jax.lax.rsqrt(jnp.maximum(ssq, 1e-24))

    o_ref[...] = h.reshape(bt, tm, cout).astype(o_ref.dtype)


def _choose_tm(n, bt, cin_ext, cout_pad, budget_bytes=12 * 1024 * 1024):
    """Largest row tile TM (multiple of 8, dividing N) whose working set fits a
    conservative VMEM budget (safe under v5e's 16 MiB default scoped VMEM)."""
    def bytes_needed(tm):
        adj_b = 2 * bt * tm * n * 2            # double-buffered bf16 adj tile
        x_b = 2 * bt * n * cin_ext * 2         # double-buffered bf16 x tile
        out_b = 2 * bt * tm * cout_pad * 4     # double-buffered f32 out tile
        live = bt * tm * (cin_ext + 2 * cout_pad) * 4   # in-kernel f32 temporaries
        return adj_b + x_b + out_b + live

    if n % 8 != 0 or bytes_needed(n) <= budget_bytes:
        return n
    tm = n - 8
    while tm > 8 and (n % tm != 0 or bytes_needed(tm) > budget_bytes):
        tm -= 8
    return max(tm, 8)


def block_1hop_forward(x, adj, weight, bias):
    """x: (B,N,Cin) f32, adj: (B,N,N) f32, weight: (Cin,Cout) f32, bias: (Cout,) f32."""
    B, N, Cin = x.shape
    Cout = weight.shape[1]

    # Lane-dense output: pad Cout up to a multiple of 128 (padded W/b columns are
    # zero, so padded h columns are exactly 0 after ReLU and the L2 norm is
    # unchanged); slice back outside the kernel.
    Cout_pad = ((Cout + 127) // 128) * 128
    w_pad = jnp.zeros((Cin, Cout_pad), jnp.float32).at[:, :Cout].set(weight)
    b_pad = jnp.zeros((1, Cout_pad), jnp.float32).at[0, :Cout].set(bias)

    # Fuse the degree computation into the aggregation matmul via a ones column.
    x_ext = jnp.concatenate([x, jnp.ones((B, N, 1), x.dtype)], axis=-1)

    # bf16 operands: adj is binary (exact); halves the dominant adj DMA and uses
    # the MXU's native dtype.  Accumulation stays f32 inside the kernel.
    x_ext = x_ext.astype(jnp.bfloat16)
    adj_bf = adj.astype(jnp.bfloat16)
    w_bf = w_pad.astype(jnp.bfloat16)

    # Pack Bt graphs per grid step so each step sees ~128 rows of work (only when
    # N is sublane-aligned, so the in-kernel row-merge reshape stays free).
    if N % 8 == 0 and N < 128:
        Bt = min(B, max(1, 128 // N))
    else:
        Bt = 1
    B_pad = ((B + Bt - 1) // Bt) * Bt
    if B_pad != B:
        pad = B_pad - B
        x_ext = jnp.pad(x_ext, ((0, pad), (0, 0), (0, 0)))
        adj_bf = jnp.pad(adj_bf, ((0, pad), (0, 0), (0, 0)))

    TM = _choose_tm(N, Bt, Cin + 1, Cout_pad)
    grid = (B_pad // Bt, N // TM)

    out = pl.pallas_call(
        _sage_block_kernel,
        out_shape=jax.ShapeDtypeStruct((B_pad, N, Cout_pad), jnp.float32),
        grid=grid,
        in_specs=[
            pl.BlockSpec((Bt, N, Cin + 1), lambda g, t: (g, 0, 0)),
            pl.BlockSpec((Bt, TM, N), lambda g, t: (g, t, 0)),
            pl.BlockSpec((Cin, Cout_pad), lambda g, t: (0, 0)),
            pl.BlockSpec((1, Cout_pad), lambda g, t: (0, 0)),
        ],
        out_specs=pl.BlockSpec((Bt, TM, Cout_pad), lambda g, t: (g, t, 0)),
        compiler_params=pltpu.CompilerParams(
            dimension_semantics=("parallel", "parallel")),
    )(x_ext, adj_bf, w_bf, b_pad)

    return out[:B, :, :Cout]


def _reference(x, adj, weight, bias):
    # Pure-JAX f32 reference faithful to the PyTorch module.
    B, N, _ = adj.shape
    eye = jnp.eye(N, dtype=adj.dtype)
    adj2 = jnp.where(eye[None] > 0, 1.0, adj)
    agg = jnp.einsum('bij,bjc->bic', adj2, x)
    deg = jnp.clip(adj2.sum(-1, keepdims=True), 1.0, None)
    h = agg / deg
    h = jnp.einsum('bnc,cd->bnd', h, weight) + bias[None, None, :]
    h = jnp.maximum(h, 0.0)
    nrm = jnp.sqrt(jnp.sum(h * h, axis=-1, keepdims=True))
    return h / jnp.maximum(nrm, 1e-12)


if __name__ == "__main__":
    B, N, Cin, Cout = 2, 16, 8, 32

    key = jax.random.PRNGKey(0)
    kx, kadj, kw, kb = jax.random.split(key, 4)

    x = jax.random.normal(kx, (B, N, Cin), dtype=jnp.float32)
    # Symmetric-ish binary adjacency, deterministic.
    a = (jax.random.uniform(kadj, (B, N, N)) > 0.7).astype(jnp.float32)
    adj = jnp.maximum(a, jnp.swapaxes(a, -1, -2))

    # Deterministic parameter init (glorot-uniform-like weight, zero bias).
    limit = (6.0 / (Cin + Cout)) ** 0.5
    weight = jax.random.uniform(kw, (Cin, Cout), minval=-limit, maxval=limit,
                                dtype=jnp.float32)
    bias = jnp.zeros((Cout,), dtype=jnp.float32)

    out = block_1hop_forward(x, adj, weight, bias)
    out = jax.block_until_ready(out)

    ref = _reference(x, adj, weight, bias)
    assert out.shape == (B, N, Cout)
    # bf16 matmul operands (f32 accumulation) -> relaxed tolerance vs f32 reference.
    err = float(jnp.max(jnp.abs(out - ref)))
    assert jnp.allclose(out, ref, atol=2e-2, rtol=2e-2), f"max abs err = {err}"

    print("KERNEL_OK")
</pallas_src>

<mosaic_0001>
module attributes {stable_mosaic.version = 11 : i64} {
  func.func @_sage_block_kernel(%arg0: i32, %arg1: i32, %arg2: memref<2x16x9xbf16, #tpu.memory_space<vmem>>, %arg3: memref<2x16x16xbf16, #tpu.memory_space<vmem>>, %arg4: memref<8x128xbf16, #tpu.memory_space<vmem>>, %arg5: memref<1x128xf32, #tpu.memory_space<vmem>>, %arg6: memref<2x16x128xf32, #tpu.memory_space<vmem>>) attributes {dimension_semantics = [#tpu.dimension_semantics<parallel>, #tpu.dimension_semantics<parallel>], iteration_bounds = array<i64: 1, 1>, scalar_prefetch = 0 : i64, scratch_operands = 0 : i64, tpu.core_type = #tpu.core_type<tc>, window_params = [{transform_indices = @transform_0, window_bounds = array<i64: 2, 16, 9>}, {transform_indices = @transform_1, window_bounds = array<i64: 2, 16, 16>}, {pipeline_mode = #tpu.pipeline_mode<synchronous>, transform_indices = @transform_2, window_bounds = array<i64: 8, 128>}, {pipeline_mode = #tpu.pipeline_mode<synchronous>, transform_indices = @transform_3, window_bounds = array<i64: 1, 128>}, {transform_indices = @transform_4, window_bounds = array<i64: 2, 16, 128>}]} {
    %c0 = arith.constant 0 : index
    %c0_0 = arith.constant 0 : index
    %c0_1 = arith.constant 0 : index
    %0 = vector.load %arg3[%c0, %c0_0, %c0_1] : memref<2x16x16xbf16, #tpu.memory_space<vmem>>, vector<2x16x16xbf16>
    %1 = tpu.iota {dimensions = array<i32: 0>} : vector<16x16xi32>
    %c16_i32 = arith.constant 16 : i32
    %2 = arith.muli %arg1, %c16_i32 : i32
    %3 = vector.broadcast %2 : i32 to vector<16x16xi32>
    %4 = arith.addi %1, %3 : vector<16x16xi32>
    %5 = tpu.iota {dimensions = array<i32: 1>} : vector<16x16xi32>
    %6 = arith.cmpi eq, %4, %5 : vector<16x16xi32>
    %7 = vector.shape_cast %6 : vector<16x16xi1> to vector<1x16x16xi1>
    %cst = arith.constant 1.000000e+00 : bf16
    %8 = vector.shape_cast %7 : vector<1x16x16xi1> to vector<1x16x16xi1>
    %9 = vector.broadcast %8 : vector<1x16x16xi1> to vector<2x16x16xi1>
    %10 = vector.broadcast %cst : bf16 to vector<2x16x16xbf16>
    %11 = arith.select %9, %10, %0 : vector<2x16x16xi1>, vector<2x16x16xbf16>
    %c0_2 = arith.constant 0 : index
    %c0_3 = arith.constant 0 : index
    %c0_4 = arith.constant 0 : index
    %12 = vector.load %arg2[%c0_2, %c0_3, %c0_4] : memref<2x16x9xbf16, #tpu.memory_space<vmem>>, vector<2x16x9xbf16>
    "tpu.trace_start"() <{level = 10 : i32, message = "bij,bjc->bic"}> : () -> ()
    %cst_5 = arith.constant dense<0.000000e+00> : vector<2x16x9xf32>
    %13 = tpu.matmul %11, %12, %cst_5 {dimension_numbers = #tpu.dot_dimension_numbers<[2], [1], [1], [2], [0, 0, 0, 1, 1, 2], [0], [0]>} : vector<2x16x16xbf16>, vector<2x16x9xbf16>, vector<2x16x9xf32> -> vector<2x16x9xf32>
    "tpu.trace_stop"() : () -> ()
    %14 = vector.shape_cast %13 : vector<2x16x9xf32> to vector<32x9xf32>
    %15 = vector.extract_strided_slice %14 {offsets = [0, 8], sizes = [32, 1], strides = [1, 1]} : vector<32x9xf32> to vector<32x1xf32>
    %cst_6 = arith.constant 1.000000e+00 : f32
    %16 = vector.broadcast %cst_6 : f32 to vector<32x1xf32>
    %17 = arith.maximumf %15, %16 : vector<32x1xf32>
    %18 = vector.extract_strided_slice %14 {offsets = [0, 0], sizes = [32, 8], strides = [1, 1]} : vector<32x9xf32> to vector<32x8xf32>
    %19 = vector.broadcast %17 : vector<32x1xf32> to vector<32x8xf32>
    %20 = arith.divf %18, %19 : vector<32x8xf32>
    %21 = arith.truncf %20 : vector<32x8xf32> to vector<32x8xbf16>
    %c0_7 = arith.constant 0 : index
    %c0_8 = arith.constant 0 : index
    %22 = vector.load %arg4[%c0_7, %c0_8] : memref<8x128xbf16, #tpu.memory_space<vmem>>, vector<8x128xbf16>
    %cst_9 = arith.constant dense<0.000000e+00> : vector<32x128xf32>
    %23 = tpu.matmul %21, %22, %cst_9 {dimension_numbers = #tpu.dot_dimension_numbers<[1], [0], [0], [1], [0, 0, 1, 1], [], []>} : vector<32x8xbf16>, vector<8x128xbf16>, vector<32x128xf32> -> vector<32x128xf32>
    %c0_10 = arith.constant 0 : index
    %c0_11 = arith.constant 0 : index
    %24 = vector.load %arg5[%c0_10, %c0_11] : memref<1x128xf32, #tpu.memory_space<vmem>>, vector<1x128xf32>
    %25 = vector.broadcast %24 : vector<1x128xf32> to vector<32x128xf32>
    %26 = arith.addf %23, %25 : vector<32x128xf32>
    %cst_12 = arith.constant 0.000000e+00 : f32
    %27 = vector.broadcast %cst_12 : f32 to vector<32x128xf32>
    %28 = arith.maximumf %26, %27 : vector<32x128xf32>
    %29 = arith.mulf %28, %28 : vector<32x128xf32>
    %cst_13 = arith.constant dense<0.000000e+00> : vector<32xf32>
    %30 = vector.multi_reduction <add>, %29, %cst_13 [1] : vector<32x128xf32> to vector<32xf32>
    %31 = vector.shape_cast %30 : vector<32xf32> to vector<32x1xf32>
    %cst_14 = arith.constant 1.000000e-24 : f32
    %32 = vector.broadcast %cst_14 : f32 to vector<32x1xf32>
    %33 = arith.maximumf %31, %32 : vector<32x1xf32>
    %34 = math.rsqrt %33 : vector<32x1xf32>
    %35 = vector.broadcast %34 : vector<32x1xf32> to vector<32x128xf32>
    %36 = arith.mulf %28, %35 : vector<32x128xf32>
    %37 = vector.shape_cast %36 : vector<32x128xf32> to vector<2x16x128xf32>
    %c0_15 = arith.constant 0 : index
    %c0_16 = arith.constant 0 : index
    %c0_17 = arith.constant 0 : index
    %38 = vector.load %arg6[%c0_15, %c0_16, %c0_17] : memref<2x16x128xf32, #tpu.memory_space<vmem>>, vector<2x16x128xf32>
    tpu.vector_store %arg6[%c0_15, %c0_16, %c0_17], %37 {strides = array<i32>} : memref<2x16x128xf32, #tpu.memory_space<vmem>>, vector<2x16x128xf32>,
    return
  }
  func.func @transform_0(%arg0: i32, %arg1: i32) -> (i32, i32, i32) {
    %c0_i32 = arith.constant 0 : i32
    %c0_i32_0 = arith.constant 0 : i32
    %c0_i32_1 = arith.constant 0 : i32
    return %arg0, %c0_i32, %c0_i32_0 : i32, i32, i32
  }
  func.func @transform_1(%arg0: i32, %arg1: i32) -> (i32, i32, i32) {
    %c0_i32 = arith.constant 0 : i32
    %c0_i32_0 = arith.constant 0 : i32
    return %arg0, %arg1, %c0_i32 : i32, i32, i32
  }
  func.func @transform_2(%arg0: i32, %arg1: i32) -> (i32, i32) {
    %c0_i32 = arith.constant 0 : i32
    %c0_i32_0 = arith.constant 0 : i32
    %c0_i32_1 = arith.constant 0 : i32
    return %c0_i32, %c0_i32_0 : i32, i32
  }
  func.func @transform_3(%arg0: i32, %arg1: i32) -> (i32, i32) {
    %c0_i32 = arith.constant 0 : i32
    %c0_i32_0 = arith.constant 0 : i32
    %c0_i32_1 = arith.constant 0 : i32
    return %c0_i32, %c0_i32_0 : i32, i32
  }
  func.func @transform_4(%arg0: i32, %arg1: i32) -> (i32, i32, i32) {
    %c0_i32 = arith.constant 0 : i32
    %c0_i32_0 = arith.constant 0 : i32
    return %arg0, %arg1, %c0_i32 : i32, i32, i32
  }
}

</mosaic_0001>

<llo_original>
// kernel: tpu_custom_call.1
$region0: #{tpu_custom_call.1}
  #allocation0 [shape = 'u32[]', space=smem, size = 0x4, offset = 0x4, fixed_abs, tag = 'smem constant byte address 0x4 - core index']
  #allocation1 [shape = 'u32[144,128]{1,0:T(1,128)}', space=vmem, size = 0x12000, scoped, tag = 'internal scratch']
  %s0 = inlined_call_operand.vmem [shape: bf16[2,16,9], index: 0, kind: input, shape index: {}]
  %s1 = inlined_call_operand.vmem [shape: bf16[2,16,16], index: 1, kind: input, shape index: {}]
  %s2 = inlined_call_operand.vmem [shape: bf16[8,128], index: 2, kind: input, shape index: {}]
  %s3 = inlined_call_operand.vmem [shape: f32[1,128], index: 3, kind: input, shape index: {}]
  %s4 = inlined_call_operand.hbm [shape: f32[2,16,128], index: 4, kind: output, shape index: {}]
  %s5 = sld [smem:[#allocation0]]
  $region26: #{tpu_custom_call.1} parent=0
    _
  %s7 = ssub.s32 1, %s5
  %s8 = scalar_select 0, %s7, %s5
  $region1: #{tpu_custom_call.1} parent=0
    #allocation2 [shape = 'u8[16384]{0}', space=vmem, size = 0x4000, scoped, tag = 'output window, operand 0, single buffered']
    #allocation3 [shape = 's32[1]{0}', space=sflag, size = 0x4, scoped, tag = 'scoped memory for tpu_custom_call.1']
    %9 = vsyncpa [#allocation3], 0
    // Predicated region
    $region2: #{tpu_custom_call.1} parent=1 // pred_check
      _
    $region3: #{tpu_custom_call.1} parent=1 // pred_check_branch
      %11 = sbr.rel (0) target = $region5
    $region4: #{tpu_custom_call.1} parent=1 // pred_region
      _
    $region5: #{tpu_custom_call.1} parent=1 // pred_fallthru
      _
    // Predicated region
    $region6: #{tpu_custom_call.1} parent=1 // pred_check
      _
    $region7: #{tpu_custom_call.1} parent=1 // pred_check_branch
      %13 = sbr.rel (0) target = $region9
    $region8: #{tpu_custom_call.1} parent=1 // pred_region
      _
    $region9: #{tpu_custom_call.1} parent=1 // pred_fallthru
      _
    // Predicated region
    $region10: #{tpu_custom_call.1} parent=1 // pred_check
      _
    $region11: #{tpu_custom_call.1} parent=1 // pred_check_branch
      %15 = sbr.rel (0) target = $region13
    $region12: #{tpu_custom_call.1} parent=1 // pred_region
      _
    $region13: #{tpu_custom_call.1} parent=1 // pred_fallthru
      _
    // Predicated region
    $region14: #{tpu_custom_call.1} parent=1 // pred_check
      _
    $region15: #{tpu_custom_call.1} parent=1 // pred_check_branch
      %17 = sbr.rel (0) target = $region17
    $region16: #{tpu_custom_call.1} parent=1 // pred_region
      _
    $region17: #{tpu_custom_call.1} parent=1 // pred_fallthru
      _
    %v20 = vld [vmem:[%s1] sm:$0xf]
    %v21 = vld [vmem:[%s1 + $0x4] sm:$0xf]
    %v22 = vld [vmem:[%s1 + $0x8] sm:$0xf]
    %v23 = vld [vmem:[%s1 + $0xc] sm:$0xf]
    %v24 = vlaneseq
    %v25 = vshrl.u32 %v24, 7
    %v26 = vadd.s32 %v25, 8
    %s27 = smul.u32 0, 16
    %v28 = vstv %s27
    %v29 = vadd.s32 %v25, %v28
    %v30 = vadd.s32 %v26, %v28
    %v31 = vlaneseq
    %v32 = vand.u32 %v31, 127
    %vm33 = vcmp.eq.s32.totalorder %v29, %v32
    %vm34 = vcmp.eq.s32.totalorder %v30, %v32
    %v35 = vsel %vm33, 1, 0
    %v36 = vsel %vm34, 1, 0
    %vm37 = vcmp.eq.s32.totalorder %v35, 1
    %vm38 = vcmp.eq.s32.totalorder %v36, 1
    %vm39 = vmpackc.low %vm37, %vm37
    %vm40 = vmpackc.low %vm38, %vm38
    %v41 = vsel %vm39, 1065369472, %v20
    %v42 = vsel %vm40, 1065369472, %v21
    %v43 = vsel %vm39, 1065369472, %v22
    %v44 = vsel %vm40, 1065369472, %v23
    %v45 = vld [vmem:[%s0] sm:$0xf]
    %v46 = vld [vmem:[%s0 + $0x4] sm:$0xf]
    %v47 = vld [vmem:[%s0 + $0x8] sm:$0xf]
    %v48 = vld [vmem:[%s0 + $0xc] sm:$0xf]
    %v51 = vunpack.c.l.b16 %v41
    %v52 = vunpack.c.l.b16 %v42
    %v53 = vpack.c.b16 %v52, %v51
    %v56 = vunpack.c.l.b16 %v45
    %v57 = vunpack.c.l.b16 %v46
    %v58 = vpack.c.b16 %v57, %v56
    %vm60 = vcmask 130048
    %v62 = vsel %vm60, %v53, 0
    %64 = vmatprep.subr.bf16.mxu0 0
    %65 = vmatpush1.bf16.msra.mxu0 0
    %66 = vmatprep.subr.bf16.mxu0 0
    %67 = vmatpush1.bf16.msra.mxu0 0
    %68 = vmatprep.subr.bf16.mxu0 0
    %69 = vmatpush1.bf16.msra.mxu0 0
    %70 = vmatprep.subr.bf16.mxu0 0
    %71 = vmatpush1.bf16.msra.mxu0 0
    %72 = vmatprep.subr.bf16.mxu0 0
    %73 = vmatpush1.bf16.msra.mxu0 0
    %74 = vmatprep.subr.bf16.mxu0 0
    %75 = vmatpush1.bf16.msra.mxu0 0
    %76 = vmatprep.subr.bf16.mxu0 0
    %77 = vmatpush1.bf16.msra.mxu0 0
    %78 = vmatprep.subr.bf16.mxu0 0
    %79 = vmatpush1.bf16.msra.mxu0 %v58
    %80 = vmatprep.subr.bf16.mxu0 0
    %81 = vmatpush2.bf16.msra.mxu0 0
    %82 = vmatprep.subr.bf16.mxu0 0
    %83 = vmatpush2.bf16.msra.mxu0 0
    %84 = vmatprep.subr.bf16.mxu0 0
    %85 = vmatpush2.bf16.msra.mxu0 0
    %86 = vmatprep.subr.bf16.mxu0 0
    %87 = vmatpush2.bf16.msra.mxu0 0
    %88 = vmatprep.subr.bf16.mxu0 0
    %89 = vmatpush2.bf16.msra.mxu0 0
    %90 = vmatprep.subr.bf16.mxu0 0
    %91 = vmatpush2.bf16.msra.mxu0 0
    %92 = vmatprep.subr.bf16.mxu0 0
    %93 = vmatpush2.bf16.msra.mxu0 0
    %94 = vmatprep.subr.bf16.mxu0 0
    %95 = vmatpush2.bf16.msra.mxu0 0
    %96 = vmatprep.mubr.bf16.mxu0 0
    %97 = vmatmul.mubr.bf16.gmra.mxu0 %v62
    %v98 = vpop.f32.mrf.mxu0
    %v99 = vadd.f32 0.0, %v98
    %v100 = vpop.f32.mrf.mxu0
    %v101 = vpop.f32.mrf.mxu0
    %v102 = vadd.f32 0.0, %v101
    %v103 = vpop.f32.mrf.mxu0
    %104 = vdwg.mxu0
    %v107 = vunpack.c.l.b16 %v43
    %v108 = vunpack.c.l.b16 %v44
    %v109 = vpack.c.b16 %v108, %v107
    %v112 = vunpack.c.l.b16 %v47
    %v113 = vunpack.c.l.b16 %v48
    %v114 = vpack.c.b16 %v113, %v112
    %v117 = vsel %vm60, %v109, 0
    %119 = vmatprep.subr.bf16.mxu0 0
    %120 = vmatpush1.bf16.msra.mxu0 0
    %121 = vmatprep.subr.bf16.mxu0 0
    %122 = vmatpush1.bf16.msra.mxu0 0
    %123 = vmatprep.subr.bf16.mxu0 0
    %124 = vmatpush1.bf16.msra.mxu0 0
    %125 = vmatprep.subr.bf16.mxu0 0
    %126 = vmatpush1.bf16.msra.mxu0 0
    %127 = vmatprep.subr.bf16.mxu0 0
    %128 = vmatpush1.bf16.msra.mxu0 0
    %129 = vmatprep.subr.bf16.mxu0 0
    %130 = vmatpush1.bf16.msra.mxu0 0
    %131 = vmatprep.subr.bf16.mxu0 0
    %132 = vmatpush1.bf16.msra.mxu0 0
    %133 = vmatprep.subr.bf16.mxu0 0
    %134 = vmatpush1.bf16.msra.mxu0 %v114
    %135 = vmatprep.subr.bf16.mxu0 0
    %136 = vmatpush2.bf16.msra.mxu0 0
    %137 = vmatprep.subr.bf16.mxu0 0
    %138 = vmatpush2.bf16.msra.mxu0 0
    %139 = vmatprep.subr.bf16.mxu0 0
    %140 = vmatpush2.bf16.msra.mxu0 0
    %141 = vmatprep.subr.bf16.mxu0 0
    %142 = vmatpush2.bf16.msra.mxu0 0
    %143 = vmatprep.subr.bf16.mxu0 0
    %144 = vmatpush2.bf16.msra.mxu0 0
    %145 = vmatprep.subr.bf16.mxu0 0
    %146 = vmatpush2.bf16.msra.mxu0 0
    %147 = vmatprep.subr.bf16.mxu0 0
    %148 = vmatpush2.bf16.msra.mxu0 0
    %149 = vmatprep.subr.bf16.mxu0 0
    %150 = vmatpush2.bf16.msra.mxu0 0
    %151 = vmatprep.mubr.bf16.mxu0 0
    %152 = vmatmul.mubr.bf16.gmra.mxu0 %v117
    %v153 = vpop.f32.mrf.mxu0
    %v154 = vadd.f32 0.0, %v153
    %v155 = vpop.f32.mrf.mxu0
    %v156 = vpop.f32.mrf.mxu0
    %v157 = vadd.f32 0.0, %v156
    %v158 = vpop.f32.mrf.mxu0
    %159 = vdwg.mxu0
    %v160 = vmax.f32 %v99, 1.0
    %v161 = vmax.f32 %v102, 1.0
    %v162 = vmax.f32 %v154, 1.0
    %v163 = vmax.f32 %v157, 1.0
    %165 = vset.pattern.permute.xlu0 8
    %166 = vperm.xlu0 %165, %v160
    %v167 = vpop.permute.xlu0 %166
    %170 = vset.pattern.permute.xlu0 8
    %171 = vperm.xlu0 %170, %v161
    %v172 = vpop.permute.xlu0 %171
    %175 = vset.pattern.permute.xlu0 8
    %176 = vperm.xlu0 %175, %v162
    %v177 = vpop.permute.xlu0 %176
    %180 = vset.pattern.permute.xlu0 8
    %181 = vperm.xlu0 %180, %v163
    %v182 = vpop.permute.xlu0 %181
    %v184 = vrcp.pop %v167
    %v185 = vmul.f32 %v99, %v184
    %v186 = vrcp.pop %v172
    %v187 = vmul.f32 %v102, %v186
    %v188 = vrcp.pop %v177
    %v189 = vmul.f32 %v154, %v188
    %v190 = vrcp.pop %v182
    %v191 = vmul.f32 %v157, %v190
    %v192 = vpack.c.bf16 %v187, %v185
    %v193 = vpack.c.bf16 %v191, %v189
    %v194 = vld [vmem:[%s2] sm:$0xf]
    %v195 = vld [vmem:[%s3] sm:$0x1]
    %v197 = vlaneseq
    %v198 = vshrl.u32 %v197, 7
    %v199 = vsub.s32 0, %v198
    %v200 = vrot.slane %v195, %v199
    %vm202 = vcmask 64512
    %v204 = vsel %vm202, %v192, 0
    %v207 = vsel %vm202, %v193, 0
    %vm209 = vcmask 1043456
    %v211 = vsel %vm209, %v194, 0
    %213 = vmatprep.subr.bf16.mxu0 0
    %214 = vmatpush1.bf16.msra.mxu0 0
    %215 = vmatprep.subr.bf16.mxu0 0
    %216 = vmatpush1.bf16.msra.mxu0 0
    %217 = vmatprep.subr.bf16.mxu0 0
    %218 = vmatpush1.bf16.msra.mxu0 0
    %219 = vmatprep.subr.bf16.mxu0 0
    %220 = vmatpush1.bf16.msra.mxu0 0
    %221 = vmatprep.subr.bf16.mxu0 0
    %222 = vmatpush1.bf16.msra.mxu0 0
    %223 = vmatprep.subr.bf16.mxu0 0
    %224 = vmatpush1.bf16.msra.mxu0 0
    %225 = vmatprep.subr.bf16.mxu0 0
    %226 = vmatpush1.bf16.msra.mxu0 0
    %227 = vmatprep.subr.bf16.mxu0 0
    %228 = vmatpush1.bf16.msra.mxu0 %v211
    %229 = vmatprep.subr.bf16.mxu0 0
    %230 = vmatpush2.bf16.msra.mxu0 0
    %231 = vmatprep.subr.bf16.mxu0 0
    %232 = vmatpush2.bf16.msra.mxu0 0
    %233 = vmatprep.subr.bf16.mxu0 0
    %234 = vmatpush2.bf16.msra.mxu0 0
    %235 = vmatprep.subr.bf16.mxu0 0
    %236 = vmatpush2.bf16.msra.mxu0 0
    %237 = vmatprep.subr.bf16.mxu0 0
    %238 = vmatpush2.bf16.msra.mxu0 0
    %239 = vmatprep.subr.bf16.mxu0 0
    %240 = vmatpush2.bf16.msra.mxu0 0
    %241 = vmatprep.subr.bf16.mxu0 0
    %242 = vmatpush2.bf16.msra.mxu0 0
    %243 = vmatprep.subr.bf16.mxu0 0
    %244 = vmatpush2.bf16.msra.mxu0 0
    %245 = vmatprep.mubr.bf16.mxu0 0
    %246 = vmatmul.mubr.bf16.gmra.mxu0 %v204
    %v247 = vpop.f32.mrf.mxu0
    %v248 = vadd.f32 %v200, %v247
    %v249 = vpop.f32.mrf.mxu0
    %v250 = vpop.f32.mrf.mxu0
    %v251 = vadd.f32 %v200, %v250
    %v252 = vpop.f32.mrf.mxu0
    %253 = vmatprep.mubr.bf16.mxu0 0
    %254 = vmatmul.mubr.bf16.gmra.mxu0 %v207
    %v255 = vpop.f32.mrf.mxu0
    %v256 = vadd.f32 %v200, %v255
    %v257 = vpop.f32.mrf.mxu0
    %v258 = vpop.f32.mrf.mxu0
    %v259 = vadd.f32 %v200, %v258
    %v260 = vpop.f32.mrf.mxu0
    %261 = vdwg.mxu0
    %v262 = vmax.f32 %v248, 0.0
    %v263 = vmax.f32 %v251, 0.0
    %v264 = vmax.f32 %v256, 0.0
    %v265 = vmax.f32 %v259, 0.0
    %v266 = vmul.f32 %v262, %v262
    %v267 = vmul.f32 %v263, %v263
    %v268 = vmul.f32 %v264, %v264
    %v269 = vmul.f32 %v265, %v265
    %270 = vadd.xlane.f32.xlu0 %v266
    %v271 = vpop.xlane.xlu0 %270
    %272 = vadd.xlane.f32.xlu0 %v267
    %v273 = vpop.xlane.xlu0 %272
    %274 = vadd.xlane.f32.xlu0 %v268
    %v275 = vpop.xlane.xlu0 %274
    %276 = vadd.xlane.f32.xlu0 %v269
    %v277 = vpop.xlane.xlu0 %276
    %v278 = vmax.f32 %v271, 1e-24
    %v279 = vmax.f32 %v273, 1e-24
    %v280 = vmax.f32 %v275, 1e-24
    %v281 = vmax.f32 %v277, 1e-24
    %v282 = vrsqrt.pop %v278
    %v283 = vrsqrt.pop %v279
    %v284 = vrsqrt.pop %v280
    %v285 = vrsqrt.pop %v281
    %v286 = vmul.f32 %v262, %v282
    %v287 = vmul.f32 %v263, %v283
    %v288 = vmul.f32 %v264, %v284
    %v289 = vmul.f32 %v265, %v285
    %290 = vst [vmem:[#allocation2] sm:$0xff] %v286
    %291 = vst [vmem:[#allocation2 + $0x8] sm:$0xff] %v287
    %292 = vst [vmem:[#allocation2 + $0x10] sm:$0xff] %v288
    %293 = vst [vmem:[#allocation2 + $0x18] sm:$0xff] %v289
    // Predicated region
    $region18: #{tpu_custom_call.1} parent=1 // pred_check
      _
    $region19: #{tpu_custom_call.1} parent=1 // pred_check_branch
      %295 = sbr.rel (0) target = $region21
    $region20: #{tpu_custom_call.1} parent=1 // pred_region
      %s297 = ssub.s32 512, 512
      %298 = vsyncadd [#allocation3], %s297
      %s299 = sshll.u32 [#allocation2], 4
      %s300 = int_to_ptr.vmem [resolvable:$true] %s299
      %305 = dma.vmem_to_hbm [thread:$0]  %s300, 512, %s4, [#allocation3], 128, 128, 8
    $region21: #{tpu_custom_call.1} parent=1 // pred_fallthru
      _
    // Predicated region
    $region22: #{tpu_custom_call.1} parent=1 // pred_check
      _
    $region23: #{tpu_custom_call.1} parent=1 // pred_check_branch
      %307 = sbr.rel (0) target = $region25
    $region24: #{tpu_custom_call.1} parent=1 // pred_region
      %308 = dma.done [#allocation3], 512
    $region25: #{tpu_custom_call.1} parent=1 // pred_fallthru
      _
    %309 = vsyncpa [#allocation3], 1

</llo_original>
